<compile_context>
chip_gen: v7x
topology: tpu7x:2x2x1
jax: 0.10.0
libtpu: 0.0.40
codegen_flags: <defaults>
</compile_context>

<pallas_src>
import jax
import jax.numpy as jnp
from jax.experimental import pallas as pl
from jax.experimental.pallas import tpu as pltpu


def _round_up(n, m):
    return ((n + m - 1) // m) * m


def qvalue_kernel(x_ref, a_ref, w1s_ref, w1a_ref, b1_ref, w2_ref, b2_ref,
                  w3_ref, b3_ref, out_ref):
    """One batch tile of: relu(relu([x|a]@W1+b1)@W2+b2)@W3+b3, output as a row."""
    # Layer 1: split-K matmul == cat([x, a], 1) @ W1, without materializing cat.
    h1 = jnp.dot(x_ref[...], w1s_ref[...], preferred_element_type=jnp.float32)
    h1 = h1 + jnp.dot(a_ref[...], w1a_ref[...],
                      preferred_element_type=jnp.float32)
    h1 = jnp.maximum(h1 + b1_ref[...], 0.0)
    # Layer 2.
    h2 = jnp.dot(h1, w2_ref[...], preferred_element_type=jnp.float32)
    h2 = jnp.maximum(h2 + b2_ref[...], 0.0)
    # Output layer (N=1): VPU multiply + XLU row reduce (MXU slot stays free),
    # then a cheap (tile_b,1)->(1,tile_b) transpose so the store is lane-dense.
    q_col = jnp.sum(h2 * w3_ref[...], axis=-1, keepdims=True) + b3_ref[...]
    q_row = jnp.transpose(q_col)[None]          # (1, 1, tile_b)
    out_ref[...] = q_row.astype(out_ref.dtype)


def qvalue_forward(x, a, params, *, tile_b=4096):
    """Tiled forward: x (B, state_dim), a (B, action_dim) -> (B, 1) float32."""
    w1s, w1a, b1, w2, b2, w3, b3 = params
    B, state_dim = x.shape
    action_dim = a.shape[1]
    hidden = w2.shape[0]

    # Batch tile: multiple of 8 (sublane); cap at ceil(B/2) so the grid has at
    # least 2 steps when possible (v7x megacore) while tiny batches still work.
    tile_b = max(8, min(tile_b, _round_up(pl.cdiv(B, 2), 8)))
    num_tiles = pl.cdiv(B, tile_b)
    grid = (num_tiles,)

    def tiled(feat):        # pipelined over the batch grid axis
        return pl.BlockSpec((tile_b, feat), lambda i: (i, 0))

    def resident(shape):    # constant index map -> stays VMEM-resident
        return pl.BlockSpec(shape, lambda i: (0,) * len(shape))

    # Lane-dense output: one (1, tile_b) row per grid step.
    out_spec = pl.BlockSpec((1, 1, tile_b), lambda i: (i, 0, 0))

    # Advisory cost + explicit VMEM budget (v5e scoped default is 16 MiB;
    # clamp at v7x's 64 MiB physical so the same budget is valid everywhere).
    flops = 2 * B * (state_dim * hidden + action_dim * hidden
                     + hidden * hidden + hidden)
    bytes_accessed = 4 * (B * (state_dim + action_dim + 1)
                          + (state_dim + action_dim + hidden + 3) * hidden + 1)
    dtype_bytes = 4
    tile_bytes = 2 * dtype_bytes * tile_b * (state_dim + action_dim + 1)
    weight_bytes = 2 * dtype_bytes * ((state_dim + action_dim + hidden
                                       + 3) * hidden + 1)
    vmem_limit = int(min(64 << 20,
                         max(16 << 20, 2 * (tile_bytes + weight_bytes))))

    out = pl.pallas_call(
        qvalue_kernel,
        out_shape=jax.ShapeDtypeStruct((num_tiles, 1, tile_b), jnp.float32),
        grid=grid,
        in_specs=[
            tiled(state_dim),                 # x
            tiled(action_dim),                # a
            resident((state_dim, hidden)),    # W1 (state rows)
            resident((action_dim, hidden)),   # W1 (action rows)
            resident((1, hidden)),            # b1
            resident((hidden, hidden)),       # W2
            resident((1, hidden)),            # b2
            resident((1, hidden)),            # W3 as a row
            resident((1, 1)),                 # b3
        ],
        out_specs=out_spec,
        compiler_params=pltpu.CompilerParams(
            dimension_semantics=("parallel",),
            vmem_limit_bytes=vmem_limit),
        cost_estimate=pl.CostEstimate(flops=flops, transcendentals=0,
                                      bytes_accessed=bytes_accessed),
    )(x, a, w1s, w1a, b1, w2, b2, w3, b3)

    # (num_tiles, 1, tile_b) -> (B, 1); tail rows (if any) are discarded.
    return out.reshape(num_tiles * tile_b)[:B].reshape(B, 1)


def init_params(key, state_dim, hidden_dim, action_dim):
    """PyTorch Linear-style uniform init; weights stored (in, out), fc1 split
    into state/action row blocks, fc_out stored as a (1, hidden) row."""
    in1 = state_dim + action_dim
    k1, k2, k3, k4, k5, k6, k7 = jax.random.split(key, 7)

    def u(k, shape, fan_in):
        bound = 1.0 / jnp.sqrt(float(fan_in))
        return jax.random.uniform(k, shape, jnp.float32, -bound, bound)

    w1s = u(k1, (state_dim, hidden_dim), in1)
    w1a = u(k2, (action_dim, hidden_dim), in1)
    b1 = u(k3, (1, hidden_dim), in1)
    w2 = u(k4, (hidden_dim, hidden_dim), hidden_dim)
    b2 = u(k5, (1, hidden_dim), hidden_dim)
    w3 = u(k6, (1, hidden_dim), hidden_dim)   # fc_out weight as a row
    b3 = u(k7, (1, 1), hidden_dim)
    return (w1s, w1a, b1, w2, b2, w3, b3)


if __name__ == "__main__":
    batch, state_dim, hidden_dim, action_dim = 2, 8, 32, 4

    key = jax.random.PRNGKey(0)
    kx, ka, kp = jax.random.split(key, 3)
    x = jax.random.normal(kx, (batch, state_dim), jnp.float32)
    a = jax.random.normal(ka, (batch, action_dim), jnp.float32)
    params = init_params(kp, state_dim, hidden_dim, action_dim)

    q = qvalue_forward(x, a, params)
    jax.block_until_ready(q)

    # Pure-JAX reference (identical to the PyTorch forward).
    w1s, w1a, b1, w2, b2, w3, b3 = params
    cat = jnp.concatenate([x, a], axis=1)
    w1 = jnp.concatenate([w1s, w1a], axis=0)
    ref = jnp.maximum(cat @ w1 + b1, 0.0)
    ref = jnp.maximum(ref @ w2 + b2, 0.0)
    ref = ref @ w3.T + b3

    assert q.shape == (batch, 1)
    assert jnp.allclose(q, ref, atol=1e-5, rtol=1e-5)

    print("KERNEL_OK")
</pallas_src>

<mosaic_0001>
module attributes {stable_mosaic.version = 11 : i64} {
  func.func @qvalue_kernel(%arg0: i32, %arg1: memref<8x8xf32, #tpu.memory_space<vmem>>, %arg2: memref<8x4xf32, #tpu.memory_space<vmem>>, %arg3: memref<8x32xf32, #tpu.memory_space<vmem>>, %arg4: memref<4x32xf32, #tpu.memory_space<vmem>>, %arg5: memref<1x32xf32, #tpu.memory_space<vmem>>, %arg6: memref<32x32xf32, #tpu.memory_space<vmem>>, %arg7: memref<1x32xf32, #tpu.memory_space<vmem>>, %arg8: memref<1x32xf32, #tpu.memory_space<vmem>>, %arg9: memref<1x1xf32, #tpu.memory_space<vmem>>, %arg10: memref<1x1x8xf32, #tpu.memory_space<vmem>>) attributes {dimension_semantics = [#tpu.dimension_semantics<parallel>], iteration_bounds = array<i64: 1>, scalar_prefetch = 0 : i64, scratch_operands = 0 : i64, tpu.core_type = #tpu.core_type<tc>, window_params = [{transform_indices = @transform_0, window_bounds = array<i64: 8, 8>}, {transform_indices = @transform_1, window_bounds = array<i64: 8, 4>}, {pipeline_mode = #tpu.pipeline_mode<synchronous>, transform_indices = @transform_2, window_bounds = array<i64: 8, 32>}, {pipeline_mode = #tpu.pipeline_mode<synchronous>, transform_indices = @transform_3, window_bounds = array<i64: 4, 32>}, {pipeline_mode = #tpu.pipeline_mode<synchronous>, transform_indices = @transform_4, window_bounds = array<i64: 1, 32>}, {pipeline_mode = #tpu.pipeline_mode<synchronous>, transform_indices = @transform_5, window_bounds = array<i64: 32, 32>}, {pipeline_mode = #tpu.pipeline_mode<synchronous>, transform_indices = @transform_6, window_bounds = array<i64: 1, 32>}, {pipeline_mode = #tpu.pipeline_mode<synchronous>, transform_indices = @transform_7, window_bounds = array<i64: 1, 32>}, {pipeline_mode = #tpu.pipeline_mode<synchronous>, transform_indices = @transform_8, window_bounds = array<i64: 1, 1>}, {transform_indices = @transform_9, window_bounds = array<i64: 1, 1, 8>}]} {
    %c0 = arith.constant 0 : index
    %c0_0 = arith.constant 0 : index
    %0 = vector.load %arg1[%c0, %c0_0] : memref<8x8xf32, #tpu.memory_space<vmem>>, vector<8x8xf32>
    %c0_1 = arith.constant 0 : index
    %c0_2 = arith.constant 0 : index
    %1 = vector.load %arg3[%c0_1, %c0_2] : memref<8x32xf32, #tpu.memory_space<vmem>>, vector<8x32xf32>
    %cst = arith.constant dense<0.000000e+00> : vector<8x32xf32>
    %2 = tpu.matmul %0, %1, %cst {dimension_numbers = #tpu.dot_dimension_numbers<[1], [0], [0], [1], [0, 0, 1, 1], [], []>} : vector<8x8xf32>, vector<8x32xf32>, vector<8x32xf32> -> vector<8x32xf32>
    %c0_3 = arith.constant 0 : index
    %c0_4 = arith.constant 0 : index
    %3 = vector.load %arg2[%c0_3, %c0_4] : memref<8x4xf32, #tpu.memory_space<vmem>>, vector<8x4xf32>
    %c0_5 = arith.constant 0 : index
    %c0_6 = arith.constant 0 : index
    %4 = vector.load %arg4[%c0_5, %c0_6] : memref<4x32xf32, #tpu.memory_space<vmem>>, vector<4x32xf32>
    %cst_7 = arith.constant dense<0.000000e+00> : vector<8x32xf32>
    %5 = tpu.matmul %3, %4, %cst_7 {dimension_numbers = #tpu.dot_dimension_numbers<[1], [0], [0], [1], [0, 0, 1, 1], [], []>} : vector<8x4xf32>, vector<4x32xf32>, vector<8x32xf32> -> vector<8x32xf32>
    %6 = arith.addf %2, %5 : vector<8x32xf32>
    %c0_8 = arith.constant 0 : index
    %c0_9 = arith.constant 0 : index
    %7 = vector.load %arg5[%c0_8, %c0_9] : memref<1x32xf32, #tpu.memory_space<vmem>>, vector<1x32xf32>
    %8 = vector.broadcast %7 : vector<1x32xf32> to vector<8x32xf32>
    %9 = arith.addf %6, %8 : vector<8x32xf32>
    %cst_10 = arith.constant 0.000000e+00 : f32
    %10 = vector.broadcast %cst_10 : f32 to vector<8x32xf32>
    %11 = arith.maximumf %9, %10 : vector<8x32xf32>
    %c0_11 = arith.constant 0 : index
    %c0_12 = arith.constant 0 : index
    %12 = vector.load %arg6[%c0_11, %c0_12] : memref<32x32xf32, #tpu.memory_space<vmem>>, vector<32x32xf32>
    %cst_13 = arith.constant dense<0.000000e+00> : vector<8x32xf32>
    %13 = tpu.matmul %11, %12, %cst_13 {dimension_numbers = #tpu.dot_dimension_numbers<[1], [0], [0], [1], [0, 0, 1, 1], [], []>} : vector<8x32xf32>, vector<32x32xf32>, vector<8x32xf32> -> vector<8x32xf32>
    %c0_14 = arith.constant 0 : index
    %c0_15 = arith.constant 0 : index
    %14 = vector.load %arg7[%c0_14, %c0_15] : memref<1x32xf32, #tpu.memory_space<vmem>>, vector<1x32xf32>
    %15 = vector.broadcast %14 : vector<1x32xf32> to vector<8x32xf32>
    %16 = arith.addf %13, %15 : vector<8x32xf32>
    %cst_16 = arith.constant 0.000000e+00 : f32
    %17 = vector.broadcast %cst_16 : f32 to vector<8x32xf32>
    %18 = arith.maximumf %16, %17 : vector<8x32xf32>
    %c0_17 = arith.constant 0 : index
    %c0_18 = arith.constant 0 : index
    %19 = vector.load %arg8[%c0_17, %c0_18] : memref<1x32xf32, #tpu.memory_space<vmem>>, vector<1x32xf32>
    %20 = vector.broadcast %19 : vector<1x32xf32> to vector<8x32xf32>
    %21 = arith.mulf %18, %20 : vector<8x32xf32>
    %cst_19 = arith.constant dense<0.000000e+00> : vector<8xf32>
    %22 = vector.multi_reduction <add>, %21, %cst_19 [1] : vector<8x32xf32> to vector<8xf32>
    %23 = vector.shape_cast %22 : vector<8xf32> to vector<8x1xf32>
    %c0_20 = arith.constant 0 : index
    %c0_21 = arith.constant 0 : index
    %24 = vector.load %arg9[%c0_20, %c0_21] : memref<1x1xf32, #tpu.memory_space<vmem>>, vector<1x1xf32>
    %25 = vector.broadcast %24 : vector<1x1xf32> to vector<8x1xf32>
    %26 = arith.addf %23, %25 : vector<8x1xf32>
    %27 = tpu.transpose %26, [1, 0] : vector<8x1xf32> -> vector<1x8xf32>
    %28 = vector.shape_cast %27 : vector<1x8xf32> to vector<1x1x8xf32>
    %c0_22 = arith.constant 0 : index
    %c0_23 = arith.constant 0 : index
    %c0_24 = arith.constant 0 : index
    %29 = vector.load %arg10[%c0_22, %c0_23, %c0_24] : memref<1x1x8xf32, #tpu.memory_space<vmem>>, vector<1x1x8xf32>
    tpu.vector_store %arg10[%c0_22, %c0_23, %c0_24], %28 {strides = array<i32>} : memref<1x1x8xf32, #tpu.memory_space<vmem>>, vector<1x1x8xf32>,
    return
  }
  func.func @transform_0(%arg0: i32) -> (i32, i32) {
    %c0_i32 = arith.constant 0 : i32
    %c0_i32_0 = arith.constant 0 : i32
    return %arg0, %c0_i32 : i32, i32
  }
  func.func @transform_1(%arg0: i32) -> (i32, i32) {
    %c0_i32 = arith.constant 0 : i32
    %c0_i32_0 = arith.constant 0 : i32
    return %arg0, %c0_i32 : i32, i32
  }
  func.func @transform_2(%arg0: i32) -> (i32, i32) {
    %c0_i32 = arith.constant 0 : i32
    %c0_i32_0 = arith.constant 0 : i32
    %c0_i32_1 = arith.constant 0 : i32
    return %c0_i32, %c0_i32_0 : i32, i32
  }
  func.func @transform_3(%arg0: i32) -> (i32, i32) {
    %c0_i32 = arith.constant 0 : i32
    %c0_i32_0 = arith.constant 0 : i32
    %c0_i32_1 = arith.constant 0 : i32
    return %c0_i32, %c0_i32_0 : i32, i32
  }
  func.func @transform_4(%arg0: i32) -> (i32, i32) {
    %c0_i32 = arith.constant 0 : i32
    %c0_i32_0 = arith.constant 0 : i32
    %c0_i32_1 = arith.constant 0 : i32
    return %c0_i32, %c0_i32_0 : i32, i32
  }
  func.func @transform_5(%arg0: i32) -> (i32, i32) {
    %c0_i32 = arith.constant 0 : i32
    %c0_i32_0 = arith.constant 0 : i32
    %c0_i32_1 = arith.constant 0 : i32
    return %c0_i32, %c0_i32_0 : i32, i32
  }
  func.func @transform_6(%arg0: i32) -> (i32, i32) {
    %c0_i32 = arith.constant 0 : i32
    %c0_i32_0 = arith.constant 0 : i32
    %c0_i32_1 = arith.constant 0 : i32
    return %c0_i32, %c0_i32_0 : i32, i32
  }
  func.func @transform_7(%arg0: i32) -> (i32, i32) {
    %c0_i32 = arith.constant 0 : i32
    %c0_i32_0 = arith.constant 0 : i32
    %c0_i32_1 = arith.constant 0 : i32
    return %c0_i32, %c0_i32_0 : i32, i32
  }
  func.func @transform_8(%arg0: i32) -> (i32, i32) {
    %c0_i32 = arith.constant 0 : i32
    %c0_i32_0 = arith.constant 0 : i32
    %c0_i32_1 = arith.constant 0 : i32
    return %c0_i32, %c0_i32_0 : i32, i32
  }
  func.func @transform_9(%arg0: i32) -> (i32, i32, i32) {
    %c0_i32 = arith.constant 0 : i32
    %c0_i32_0 = arith.constant 0 : i32
    %c0_i32_1 = arith.constant 0 : i32
    return %arg0, %c0_i32, %c0_i32_0 : i32, i32, i32
  }
}

</mosaic_0001>

<llo_original>
// kernel: tpu_custom_call.1
$region0: #{tpu_custom_call.1}
  #allocation0 [shape = 'u32[]', space=smem, size = 0x4, offset = 0x4, fixed_abs, tag = 'smem constant byte address 0x4 - core index']
  #allocation1 [shape = 'u32[144,128]{1,0:T(1,128)}', space=vmem, size = 0x12000, scoped, tag = 'internal scratch']
  #allocation2 [shape = 'f32[1,1]{1,0:T(1,128)S(1)}', space=vmem, size = 0x200, scoped, tag = 'scoped memory for tpu_custom_call.1']
  %s0 = inlined_call_operand.vmem [shape: f32[2,8], index: 0, kind: input, shape index: {}]
  %s1 = inlined_call_operand.hbm [shape: f32[2,4], index: 1, kind: input, shape index: {}]
  %s2 = inlined_call_operand.vmem [shape: f32[8,32], index: 2, kind: input, shape index: {}]
  %s3 = inlined_call_operand.vmem [shape: f32[4,32], index: 3, kind: input, shape index: {}]
  %s4 = inlined_call_operand.vmem [shape: f32[1,32], index: 4, kind: input, shape index: {}]
  %s5 = inlined_call_operand.hbm [shape: f32[32,32], index: 5, kind: input, shape index: {}]
  %s6 = inlined_call_operand.vmem [shape: f32[1,32], index: 6, kind: input, shape index: {}]
  %s7 = inlined_call_operand.vmem [shape: f32[1,32], index: 7, kind: input, shape index: {}]
  %s8 = inlined_call_operand.<no memory space> [shape: f32[1,1], index: 8, kind: input, shape index: {}]
  %s9 = inlined_call_operand.hbm [shape: f32[1,1,8], index: 9, kind: output, shape index: {}]
  %s10 = sld [smem:[#allocation0]]
  $region54: #{tpu_custom_call.1} parent=0
    _
  %s12 = ssub.s32 1, %s10
  %s13 = scalar_select 0, %s12, %s10
  %v14 = vstv %s8
  %15 = vst [vmem:[#allocation2] sm:$0x1] %v14
  $region1: #{tpu_custom_call.1} parent=0
    #allocation3 [shape = 'u8[4096]{0}', space=vmem, size = 0x1000, scoped, tag = 'input window, operand 1, single buffered']
    #allocation4 [shape = 's32[1]{0}', space=sflag, size = 0x4, scoped, tag = 'scoped memory for tpu_custom_call.1']
    #allocation5 [shape = 's32[1]{0}', space=sflag, size = 0x4, scoped, tag = 'scoped memory for tpu_custom_call.1']
    #allocation6 [shape = 'u8[16384]{0}', space=vmem, size = 0x4000, scoped, tag = 'input window, operand 5, single buffered']
    #allocation7 [shape = 's32[1]{0}', space=sflag, size = 0x4, scoped, tag = 'scoped memory for tpu_custom_call.1']
    #allocation8 [shape = 'u8[512]{0}', space=vmem, size = 0x400, scoped, tag = 'output window, operand 0, single buffered']
    %16 = vsyncpa [#allocation4], 0
    %17 = vsyncpa [#allocation7], 0
    %18 = vsyncpa [#allocation5], 0
    // Predicated region
    $region2: #{tpu_custom_call.1} parent=1 // pred_check
      _
    $region3: #{tpu_custom_call.1} parent=1 // pred_check_branch
      %20 = sbr.rel (0) target = $region5
    $region4: #{tpu_custom_call.1} parent=1 // pred_region
      _
    $region5: #{tpu_custom_call.1} parent=1 // pred_fallthru
      _
    // Predicated region
    $region6: #{tpu_custom_call.1} parent=1 // pred_check
      _
    $region7: #{tpu_custom_call.1} parent=1 // pred_check_branch
      %22 = sbr.rel (0) target = $region9
    $region8: #{tpu_custom_call.1} parent=1 // pred_region
      %s24 = ssub.s32 128, 32
      %25 = vsyncadd [#allocation4], %s24
      %s26 = sshll.u32 [#allocation3], 4
      %s27 = int_to_ptr.vmem [resolvable:$true] %s26
      %32 = dma.hbm_to_vmem [thread:$0]  %s1, 32, %s27, [#allocation4], 32, 32, 2
    $region9: #{tpu_custom_call.1} parent=1 // pred_fallthru
      _
    // Predicated region
    $region10: #{tpu_custom_call.1} parent=1 // pred_check
      _
    $region11: #{tpu_custom_call.1} parent=1 // pred_check_branch
      %34 = sbr.rel (0) target = $region13
    $region12: #{tpu_custom_call.1} parent=1 // pred_region
      _
    $region13: #{tpu_custom_call.1} parent=1 // pred_fallthru
      _
    // Predicated region
    $region14: #{tpu_custom_call.1} parent=1 // pred_check
      _
    $region15: #{tpu_custom_call.1} parent=1 // pred_check_branch
      %36 = sbr.rel (0) target = $region17
    $region16: #{tpu_custom_call.1} parent=1 // pred_region
      _
    $region17: #{tpu_custom_call.1} parent=1 // pred_fallthru
      _
    // Predicated region
    $region18: #{tpu_custom_call.1} parent=1 // pred_check
      _
    $region19: #{tpu_custom_call.1} parent=1 // pred_check_branch
      %38 = sbr.rel (0) target = $region21
    $region20: #{tpu_custom_call.1} parent=1 // pred_region
      _
    $region21: #{tpu_custom_call.1} parent=1 // pred_fallthru
      _
    // Predicated region
    $region22: #{tpu_custom_call.1} parent=1 // pred_check
      _
    $region23: #{tpu_custom_call.1} parent=1 // pred_check_branch
      %40 = sbr.rel (0) target = $region25
    $region24: #{tpu_custom_call.1} parent=1 // pred_region
      %s42 = ssub.s32 512, 512
      %43 = vsyncadd [#allocation7], %s42
      %s44 = sshll.u32 [#allocation6], 4
      %s45 = int_to_ptr.vmem [resolvable:$true] %s44
      %50 = dma.hbm_to_vmem [thread:$0]  %s5, 512, %s45, [#allocation7], 128, 128, 8
    $region25: #{tpu_custom_call.1} parent=1 // pred_fallthru
      _
    // Predicated region
    $region26: #{tpu_custom_call.1} parent=1 // pred_check
      _
    $region27: #{tpu_custom_call.1} parent=1 // pred_check_branch
      %52 = sbr.rel (0) target = $region29
    $region28: #{tpu_custom_call.1} parent=1 // pred_region
      _
    $region29: #{tpu_custom_call.1} parent=1 // pred_fallthru
      _
    // Predicated region
    $region30: #{tpu_custom_call.1} parent=1 // pred_check
      _
    $region31: #{tpu_custom_call.1} parent=1 // pred_check_branch
      %54 = sbr.rel (0) target = $region33
    $region32: #{tpu_custom_call.1} parent=1 // pred_region
      _
    $region33: #{tpu_custom_call.1} parent=1 // pred_fallthru
      _
    // Predicated region
    $region34: #{tpu_custom_call.1} parent=1 // pred_check
      _
    $region35: #{tpu_custom_call.1} parent=1 // pred_check_branch
      %56 = sbr.rel (0) target = $region37
    $region36: #{tpu_custom_call.1} parent=1 // pred_region
      _
    $region37: #{tpu_custom_call.1} parent=1 // pred_fallthru
      _
    // Predicated region
    $region38: #{tpu_custom_call.1} parent=1 // pred_check
      _
    $region39: #{tpu_custom_call.1} parent=1 // pred_check_branch
      %58 = sbr.rel (0) target = $region41
    $region40: #{tpu_custom_call.1} parent=1 // pred_region
      %59 = dma.done [#allocation4], 128
    $region41: #{tpu_custom_call.1} parent=1 // pred_fallthru
      _
    // Predicated region
    $region42: #{tpu_custom_call.1} parent=1 // pred_check
      _
    $region43: #{tpu_custom_call.1} parent=1 // pred_check_branch
      %61 = sbr.rel (0) target = $region45
    $region44: #{tpu_custom_call.1} parent=1 // pred_region
      %62 = dma.done [#allocation7], 512
    $region45: #{tpu_custom_call.1} parent=1 // pred_fallthru
      _
    %v63 = vld [vmem:[%s0] sm:$0xff]
    %v64 = vld [vmem:[%s2] sm:$0xff]
    %v65 = vld [vmem:[#allocation3] sm:$0xff]
    %v66 = vld [vmem:[%s3] sm:$0xf]
    %vm67 = vcmask 31744
    %v69 = vsel %vm67, %v65, 0
    %vm71 = vcmask 1043456
    %v73 = vsel %vm71, %v66, 0
    %75 = vmatprep.subr.mxu0 0.0
    %76 = vmatpush1.msra.mxu0 %v73
    %77 = vmatprep.subr.mxu0 0.0
    %78 = vmatpush1.msra.mxu0 0.0
    %79 = vmatprep.subr.mxu0 0.0
    %80 = vmatpush1.msra.mxu0 0.0
    %81 = vmatprep.subr.mxu0 0.0
    %82 = vmatpush1.msra.mxu0 0.0
    %83 = vmatprep.subr.mxu0 0.0
    %84 = vmatpush1.msra.mxu0 0.0
    %85 = vmatprep.subr.mxu0 0.0
    %86 = vmatpush1.msra.mxu0 0.0
    %87 = vmatprep.subr.mxu0 0.0
    %88 = vmatpush1.msra.mxu0 0.0
    %89 = vmatprep.subr.mxu0 0.0
    %90 = vmatpush1.msra.mxu0 0.0
    %91 = vmatprep.subr.mxu0 0.0
    %92 = vmatpush1.msra.mxu0 0.0
    %93 = vmatprep.subr.mxu0 0.0
    %94 = vmatpush1.msra.mxu0 0.0
    %95 = vmatprep.subr.mxu0 0.0
    %96 = vmatpush1.msra.mxu0 0.0
    %97 = vmatprep.subr.mxu0 0.0
    %98 = vmatpush1.msra.mxu0 0.0
    %99 = vmatprep.subr.mxu0 0.0
    %100 = vmatpush1.msra.mxu0 0.0
    %101 = vmatprep.subr.mxu0 0.0
    %102 = vmatpush1.msra.mxu0 0.0
    %103 = vmatprep.subr.mxu0 0.0
    %104 = vmatpush1.msra.mxu0 0.0
    %105 = vmatprep.subr.mxu0 0.0
    %106 = vmatpush1.msra.mxu0 0.0
    %107 = vmatprep.subr.mxu0 0.0
    %108 = vmatpush1.msra.mxu0 0.0
    %109 = vmatprep.subr.mxu0 0.0
    %110 = vmatpush1.msra.mxu0 0.0
    %111 = vmatprep.subr.mxu0 0.0
    %112 = vmatpush1.msra.mxu0 0.0
    %113 = vmatprep.subr.mxu0 0.0
    %114 = vmatpush1.msra.mxu0 0.0
    %115 = vmatprep.subr.mxu0 0.0
    %116 = vmatpush1.msra.mxu0 0.0
    %117 = vmatprep.subr.mxu0 0.0
    %118 = vmatpush1.msra.mxu0 0.0
    %119 = vmatprep.subr.mxu0 0.0
    %120 = vmatpush1.msra.mxu0 0.0
    %121 = vmatprep.subr.mxu0 0.0
    %122 = vmatpush1.msra.mxu0 0.0
    %123 = vmatprep.subr.mxu0 0.0
    %124 = vmatpush1.msra.mxu0 0.0
    %125 = vmatprep.subr.mxu0 0.0
    %126 = vmatpush1.msra.mxu0 0.0
    %127 = vmatprep.subr.mxu0 0.0
    %128 = vmatpush1.msra.mxu0 0.0
    %129 = vmatprep.subr.mxu0 0.0
    %130 = vmatpush1.msra.mxu0 0.0
    %131 = vmatprep.subr.mxu0 0.0
    %132 = vmatpush1.msra.mxu0 0.0
    %133 = vmatprep.subr.mxu0 0.0
    %134 = vmatpush1.msra.mxu0 0.0
    %135 = vmatprep.subr.mxu0 0.0
    %136 = vmatpush1.msra.mxu0 0.0
    %137 = vmatprep.subr.mxu0 0.0
    %138 = vmatpush1.msra.mxu0 0.0
    %139 = vmatprep.mubr.f32.mxu0 0.0
    %140 = vmatmul.mubr.f32.gmra.mrb[0].mxu0 %v69
    %v141 = vpop.f32.mrb[0].mxu0
    %v142 = vadd.f32 0.0, %v141
    %v143 = vpop.f32.mrb[0].mxu0
    %144 = vdwg.mxu0
    %vm145 = vcmask 64512
    %v147 = vsel %vm145, %v63, 0
    %149 = vmatprep.subr.mxu0 0.0
    %150 = vmatpush1.msra.mxu0 %v64
    %151 = vmatprep.subr.mxu0 0.0
    %152 = vmatpush1.msra.mxu0 0.0
    %153 = vmatprep.subr.mxu0 0.0
    %154 = vmatpush1.msra.mxu0 0.0
    %155 = vmatprep.subr.mxu0 0.0
    %156 = vmatpush1.msra.mxu0 0.0
    %157 = vmatprep.subr.mxu0 0.0
    %158 = vmatpush1.msra.mxu0 0.0
    %159 = vmatprep.subr.mxu0 0.0
    %160 = vmatpush1.msra.mxu0 0.0
    %161 = vmatprep.subr.mxu0 0.0
    %162 = vmatpush1.msra.mxu0 0.0
    %163 = vmatprep.subr.mxu0 0.0
    %164 = vmatpush1.msra.mxu0 0.0
    %165 = vmatprep.subr.mxu0 0.0
    %166 = vmatpush1.msra.mxu0 0.0
    %167 = vmatprep.subr.mxu0 0.0
    %168 = vmatpush1.msra.mxu0 0.0
    %169 = vmatprep.subr.mxu0 0.0
    %170 = vmatpush1.msra.mxu0 0.0
    %171 = vmatprep.subr.mxu0 0.0
    %172 = vmatpush1.msra.mxu0 0.0
    %173 = vmatprep.subr.mxu0 0.0
    %174 = vmatpush1.msra.mxu0 0.0
    %175 = vmatprep.subr.mxu0 0.0
    %176 = vmatpush1.msra.mxu0 0.0
    %177 = vmatprep.subr.mxu0 0.0
    %178 = vmatpush1.msra.mxu0 0.0
    %179 = vmatprep.subr.mxu0 0.0
    %180 = vmatpush1.msra.mxu0 0.0
    %181 = vmatprep.subr.mxu0 0.0
    %182 = vmatpush1.msra.mxu0 0.0
    %183 = vmatprep.subr.mxu0 0.0
    %184 = vmatpush1.msra.mxu0 0.0
    %185 = vmatprep.subr.mxu0 0.0
    %186 = vmatpush1.msra.mxu0 0.0
    %187 = vmatprep.subr.mxu0 0.0
    %188 = vmatpush1.msra.mxu0 0.0
    %189 = vmatprep.subr.mxu0 0.0
    %190 = vmatpush1.msra.mxu0 0.0
    %191 = vmatprep.subr.mxu0 0.0
    %192 = vmatpush1.msra.mxu0 0.0
    %193 = vmatprep.subr.mxu0 0.0
    %194 = vmatpush1.msra.mxu0 0.0
    %195 = vmatprep.subr.mxu0 0.0
    %196 = vmatpush1.msra.mxu0 0.0
    %197 = vmatprep.subr.mxu0 0.0
    %198 = vmatpush1.msra.mxu0 0.0
    %199 = vmatprep.subr.mxu0 0.0
    %200 = vmatpush1.msra.mxu0 0.0
    %201 = vmatprep.subr.mxu0 0.0
    %202 = vmatpush1.msra.mxu0 0.0
    %203 = vmatprep.subr.mxu0 0.0
    %204 = vmatpush1.msra.mxu0 0.0
    %205 = vmatprep.subr.mxu0 0.0
    %206 = vmatpush1.msra.mxu0 0.0
    %207 = vmatprep.subr.mxu0 0.0
    %208 = vmatpush1.msra.mxu0 0.0
    %209 = vmatprep.subr.mxu0 0.0
    %210 = vmatpush1.msra.mxu0 0.0
    %211 = vmatprep.subr.mxu0 0.0
    %212 = vmatpush1.msra.mxu0 0.0
    %213 = vmatprep.mubr.f32.mxu0 0.0
    %214 = vmatmul.mubr.f32.gmra.mrb[0].mxu0 %v147
    %v215 = vpop.f32.mrb[0].mxu0
    %v216 = vadd.f32 %v142, %v215
    %v217 = vpop.f32.mrb[0].mxu0
    %218 = vdwg.mxu0
    %v219 = vld [vmem:[%s4] sm:$0x1]
    %v221 = vlaneseq
    %v222 = vshrl.u32 %v221, 7
    %v223 = vsub.s32 0, %v222
    %v224 = vrot.slane %v219, %v223
    %v226 = vadd.f32 %v216, %v224
    %v227 = vmax.f32 %v226, 0.0
    %v228 = vld [vmem:[#allocation6] sm:$0xff]
    %v229 = vld [vmem:[#allocation6 + $0x8] sm:$0xff]
    %v230 = vld [vmem:[#allocation6 + $0x10] sm:$0xff]
    %v231 = vld [vmem:[#allocation6 + $0x18] sm:$0xff]
    %v232 = vld [vmem:[%s6] sm:$0x1]
    %v234 = vlaneseq
    %v235 = vshrl.u32 %v234, 7
    %v236 = vsub.s32 0, %v235
    %v237 = vrot.slane %v232, %v236
    %vm239 = vcmask 261120
    %v241 = vsel %vm239, %v227, 0
    %243 = vmatprep.subr.mxu0 0.0
    %244 = vmatpush1.msra.mxu0 %v228
    %245 = vmatprep.subr.mxu0 0.0
    %246 = vmatpush1.msra.mxu0 %v229
    %247 = vmatprep.subr.mxu0 0.0
    %248 = vmatpush1.msra.mxu0 %v230
    %249 = vmatprep.subr.mxu0 0.0
    %250 = vmatpush1.msra.mxu0 %v231
    %251 = vmatprep.subr.mxu0 0.0
    %252 = vmatpush1.msra.mxu0 0.0
    %253 = vmatprep.subr.mxu0 0.0
    %254 = vmatpush1.msra.mxu0 0.0
    %255 = vmatprep.subr.mxu0 0.0
    %256 = vmatpush1.msra.mxu0 0.0
    %257 = vmatprep.subr.mxu0 0.0
    %258 = vmatpush1.msra.mxu0 0.0
    %259 = vmatprep.subr.mxu0 0.0
    %260 = vmatpush1.msra.mxu0 0.0
    %261 = vmatprep.subr.mxu0 0.0
    %262 = vmatpush1.msra.mxu0 0.0
    %263 = vmatprep.subr.mxu0 0.0
    %264 = vmatpush1.msra.mxu0 0.0
    %265 = vmatprep.subr.mxu0 0.0
    %266 = vmatpush1.msra.mxu0 0.0
    %267 = vmatprep.subr.mxu0 0.0
    %268 = vmatpush1.msra.mxu0 0.0
    %269 = vmatprep.subr.mxu0 0.0
    %270 = vmatpush1.msra.mxu0 0.0
    %271 = vmatprep.subr.mxu0 0.0
    %272 = vmatpush1.msra.mxu0 0.0
    %273 = vmatprep.subr.mxu0 0.0
    %274 = vmatpush1.msra.mxu0 0.0
    %275 = vmatprep.subr.mxu0 0.0
    %276 = vmatpush1.msra.mxu0 0.0
    %277 = vmatprep.subr.mxu0 0.0
    %278 = vmatpush1.msra.mxu0 0.0
    %279 = vmatprep.subr.mxu0 0.0
    %280 = vmatpush1.msra.mxu0 0.0
    %281 = vmatprep.subr.mxu0 0.0
    %282 = vmatpush1.msra.mxu0 0.0
    %283 = vmatprep.subr.mxu0 0.0
    %284 = vmatpush1.msra.mxu0 0.0
    %285 = vmatprep.subr.mxu0 0.0
    %286 = vmatpush1.msra.mxu0 0.0
    %287 = vmatprep.subr.mxu0 0.0
    %288 = vmatpush1.msra.mxu0 0.0
    %289 = vmatprep.subr.mxu0 0.0
    %290 = vmatpush1.msra.mxu0 0.0
    %291 = vmatprep.subr.mxu0 0.0
    %292 = vmatpush1.msra.mxu0 0.0
    %293 = vmatprep.subr.mxu0 0.0
    %294 = vmatpush1.msra.mxu0 0.0
    %295 = vmatprep.subr.mxu0 0.0
    %296 = vmatpush1.msra.mxu0 0.0
    %297 = vmatprep.subr.mxu0 0.0
    %298 = vmatpush1.msra.mxu0 0.0
    %299 = vmatprep.subr.mxu0 0.0
    %300 = vmatpush1.msra.mxu0 0.0
    %301 = vmatprep.subr.mxu0 0.0
    %302 = vmatpush1.msra.mxu0 0.0
    %303 = vmatprep.subr.mxu0 0.0
    %304 = vmatpush1.msra.mxu0 0.0
    %305 = vmatprep.subr.mxu0 0.0
    %306 = vmatpush1.msra.mxu0 0.0
    %307 = vmatprep.mubr.f32.mxu0 0.0
    %308 = vmatmul.mubr.f32.gmra.mrb[0].mxu0 %v241
    %v309 = vpop.f32.mrb[0].mxu0
    %v310 = vadd.f32 %v237, %v309
    %v311 = vpop.f32.mrb[0].mxu0
    %312 = vdwg.mxu0
    %v313 = vmax.f32 %v310, 0.0
    %v314 = vld [vmem:[%s7] sm:$0x1]
    %v316 = vlaneseq
    %v317 = vshrl.u32 %v316, 7
    %v318 = vsub.s32 0, %v317
    %v319 = vrot.slane %v314, %v318
    %v321 = vmul.f32 %v313, %v319
    %v322 = vsel %vm239, %v321, 0.0
    %323 = vadd.xlane.f32.xlu0 %v322
    %v324 = vpop.xlane.xlu0 %323
    %v325 = vld [vmem:[#allocation2] sm:$0x1]
    %v327 = vlaneseq
    %v328 = vshrl.u32 %v327, 7
    %v329 = vsub.s32 0, %v328
    %v330 = vrot.slane %v325, %v329
    %v332 = vadd.f32 %v324, %v330
    %333 = vxpose.xlu0.b32.start [1/16] %v332, 128
    %334 = vxpose.xlu0.b32.cont [2/16] 0.0, 128
    %335 = vxpose.xlu0.b32.cont [3/16] 0.0, 128
    %336 = vxpose.xlu0.b32.cont [4/16] 0.0, 128
    %337 = vxpose.xlu0.b32.cont [5/16] 0.0, 128
    %338 = vxpose.xlu0.b32.cont [6/16] 0.0, 128
    %339 = vxpose.xlu0.b32.cont [7/16] 0.0, 128
    %340 = vxpose.xlu0.b32.cont [8/16] 0.0, 128
    %341 = vxpose.xlu0.b32.cont [9/16] 0.0, 128
    %342 = vxpose.xlu0.b32.cont [10/16] 0.0, 128
    %343 = vxpose.xlu0.b32.cont [11/16] 0.0, 128
    %344 = vxpose.xlu0.b32.cont [12/16] 0.0, 128
    %345 = vxpose.xlu0.b32.cont [13/16] 0.0, 128
    %346 = vxpose.xlu0.b32.cont [14/16] 0.0, 128
    %347 = vxpose.xlu0.b32.cont [15/16] 0.0, 128
    %348 = vxpose.xlu0.b32.end [16/16] 0.0, 128
    %v349 = vpop.trf.xlu0
    %v350 = vpop.trf.xlu0
    %v351 = vpop.trf.xlu0
    %v352 = vpop.trf.xlu0
    %v353 = vpop.trf.xlu0
    %v354 = vpop.trf.xlu0
    %v355 = vpop.trf.xlu0
    %v356 = vpop.trf.xlu0
    %v357 = vpop.trf.xlu0
    %v358 = vpop.trf.xlu0
    %v359 = vpop.trf.xlu0
    %v360 = vpop.trf.xlu0
    %v361 = vpop.trf.xlu0
    %v362 = vpop.trf.xlu0
    %v363 = vpop.trf.xlu0
    %v364 = vpop.trf.xlu0
    %vm365 = vcmask 57344
    %366 = vst.msk [vmem:[#allocation8] sm:$0x1] %vm365, %v349
    // Predicated region
    $region46: #{tpu_custom_call.1} parent=1 // pred_check
      _
    $region47: #{tpu_custom_call.1} parent=1 // pred_check_branch
      %368 = sbr.rel (0) target = $region49
    $region48: #{tpu_custom_call.1} parent=1 // pred_region
      %s370 = ssub.s32 16, 16
      %371 = vsyncadd [#allocation5], %s370
      %s373 = sshll.u32 [#allocation8], 4
      %s374 = int_to_ptr.vmem [resolvable:$true] %s373
      %376 = dma.vmem_to_hbm [thread:$0]  %s374, 16, %s9, [#allocation5]
    $region49: #{tpu_custom_call.1} parent=1 // pred_fallthru
      _
    // Predicated region
    $region50: #{tpu_custom_call.1} parent=1 // pred_check
      _
    $region51: #{tpu_custom_call.1} parent=1 // pred_check_branch
      %378 = sbr.rel (0) target = $region53
    $region52: #{tpu_custom_call.1} parent=1 // pred_region
      %379 = dma.done [#allocation5], 16
    $region53: #{tpu_custom_call.1} parent=1 // pred_fallthru
      _
    %380 = vsyncpa [#allocation4], 1
    %381 = vsyncpa [#allocation7], 1
    %382 = vsyncpa [#allocation5], 1

</llo_original>
